<compile_context>
chip_gen: v5e
topology: v5e:2x2
jax: 0.10.0
libtpu: 0.0.40
codegen_flags: <defaults>
</compile_context>

<pallas_src>
import jax
import jax.numpy as jnp
from jax.experimental import pallas as pl
from jax.experimental.pallas import tpu as pltpu


def _round_up(x, m):
    return ((x + m - 1) // m) * m


def critic2_kernel(sa_ref, wA_ref, bA_ref, wB_ref, bB_ref,
                   w4_ref, b4_ref, w5_ref, b5_ref, out_ref):
    # Fused layer A: [s|a] @ [[w1,0,0],[0,I,-I]] + [b1|0|0] -> [s@w1+b1 | a | -a]
    # Plain ReLU on everything; the (a, -a) split keeps the action stream
    # linear after the second matmul since relu(a) - relu(-a) == a.
    x1 = jnp.maximum(
        jnp.dot(sa_ref[...], wA_ref[...],
                preferred_element_type=jnp.float32) + bA_ref[...], 0.0)

    # Fused layer B: [relu(s@w1+b1) | relu(a) | relu(-a)] @ vstack([w2, w3, -w3])
    #                + (b2 + b3)
    x2 = jnp.dot(x1.astype(jnp.bfloat16), wB_ref[...],
                 preferred_element_type=jnp.float32) + bB_ref[...]

    # Output head: Linear -> ReLU -> (lane-dense padded) Linear.
    h = jnp.maximum(
        jnp.dot(x2.astype(jnp.bfloat16), w4_ref[...],
                preferred_element_type=jnp.float32) + b4_ref[...], 0.0)
    out_ref[...] = jnp.dot(h.astype(jnp.bfloat16), w5_ref[...],
                           preferred_element_type=jnp.float32) + b5_ref[...]


def critic2_forward(s, a, params, *, tile_m=256):
    """s: [B, dim_state], a: [B, dim_action]. Returns [B, 1] float32."""
    (w1, b1, w2, b2, w3, b3, w4, b4, w5, b5) = params
    f32, bf16 = jnp.float32, jnp.bfloat16

    B, ds = s.shape
    da = a.shape[1]
    h1 = w1.shape[1]
    h2 = w2.shape[1]
    n_out = 128  # lane-dense output width (column 0 is the real value)

    # ---- one-time fused operand construction (all in f32) ----
    eye = jnp.eye(da, dtype=f32)
    wA = jnp.zeros((ds + da, h1 + 2 * da), f32)
    wA = wA.at[:ds, :h1].set(w1)
    wA = wA.at[ds:, h1:h1 + da].set(eye)
    wA = wA.at[ds:, h1 + da:].set(-eye)
    bA = jnp.concatenate([b1, jnp.zeros((2 * da,), f32)]).reshape(1, -1)

    wB = jnp.concatenate([w2, w3, -w3], axis=0)      # [h1 + 2*da, h2]
    bB = (b2 + b3).reshape(1, -1)                    # pre-summed bias (f32)

    w5p = jnp.zeros((h2, n_out), f32).at[:, :1].set(w5)
    b5p = jnp.zeros((1, n_out), f32).at[0, 0].set(b5[0])

    # ---- bf16 MXU operands (biases stay f32), batch padding/tiling ----
    tm = min(tile_m, _round_up(B, 8))
    b_pad = _round_up(B, tm)
    sa = jnp.concatenate([s, a], axis=1)
    if b_pad != B:
        sa = jnp.pad(sa, ((0, b_pad - B), (0, 0)))
    sa = sa.astype(bf16)
    wA_b, wB_b, w4_b, w5_b = (x.astype(bf16) for x in (wA, wB, w4, w5p))

    const2d = lambda i: (0, 0)

    out = pl.pallas_call(
        critic2_kernel,
        out_shape=jax.ShapeDtypeStruct((b_pad, n_out), jnp.float32),
        grid=(b_pad // tm,),
        in_specs=[
            pl.BlockSpec((tm, ds + da), lambda i: (i, 0)),     # streamed input
            pl.BlockSpec(wA_b.shape, const2d),                 # resident weights
            pl.BlockSpec(bA.shape, const2d),
            pl.BlockSpec(wB_b.shape, const2d),
            pl.BlockSpec(bB.shape, const2d),
            pl.BlockSpec(w4_b.shape, const2d),
            pl.BlockSpec((1, h2), const2d),
            pl.BlockSpec(w5_b.shape, const2d),
            pl.BlockSpec(b5p.shape, const2d),
        ],
        out_specs=pl.BlockSpec((tm, n_out), lambda i: (i, 0)),
        compiler_params=pltpu.CompilerParams(
            dimension_semantics=("parallel",)),
    )(sa, wA_b, bA, wB_b, bB, w4_b, b4.reshape(1, -1), w5_b, b5p)

    return out[:B, :1]


def init_params(key, dim_state, dim_action, hidden_size=(128, 256)):
    """Deterministic synthetic init. Weights stored as [in, out] (transposed
    relative to PyTorch's [out, in])."""
    h1, h2 = hidden_size
    keys = jax.random.split(key, 10)

    def lin(kw, kb, fan_in, fan_out):
        bound = 1.0 / jnp.sqrt(fan_in)
        w = jax.random.uniform(kw, (fan_in, fan_out), jnp.float32, -bound, bound)
        b = jax.random.uniform(kb, (fan_out,), jnp.float32, -bound, bound)
        return w, b

    w1, b1 = lin(keys[0], keys[1], dim_state, h1)
    w2, b2 = lin(keys[2], keys[3], h1, h2)
    w3, b3 = lin(keys[4], keys[5], dim_action, h2)
    w4, b4 = lin(keys[6], keys[7], h2, h2)
    w5, b5 = lin(keys[8], keys[9], h2, 1)
    return (w1, b1, w2, b2, w3, b3, w4, b4, w5, b5)


def critic2_reference(s, a, params):
    (w1, b1, w2, b2, w3, b3, w4, b4, w5, b5) = params
    s_h = jnp.maximum(s @ w1 + b1, 0.0)
    s2 = s_h @ w2 + b2
    a1 = a @ w3 + b3
    x = s2 + a1
    h = jnp.maximum(x @ w4 + b4, 0.0)
    return h @ w5 + b5


if __name__ == "__main__":
    key = jax.random.PRNGKey(0)
    k_s, k_a, k_p = jax.random.split(key, 3)

    batch = 8
    dim_state = 32
    dim_action = 16
    hidden = (128, 256)

    s = jax.random.normal(k_s, (batch, dim_state), jnp.float32)
    a = jax.random.normal(k_a, (batch, dim_action), jnp.float32)
    params = init_params(k_p, dim_state, dim_action, hidden)

    out = critic2_forward(s, a, params)
    out = jax.block_until_ready(out)

    ref = critic2_reference(s, a, params)
    assert out.shape == (batch, 1), out.shape
    # bf16 MXU operands with f32 accumulation -> loosened tolerance vs f32 ref.
    assert jnp.allclose(out, ref, atol=5e-2, rtol=5e-2), (out, ref)

    print("KERNEL_OK")
</pallas_src>

<mosaic_0001>
module attributes {stable_mosaic.version = 11 : i64} {
  func.func @critic2_kernel(%arg0: i32, %arg1: memref<8x48xbf16, #tpu.memory_space<vmem>>, %arg2: memref<48x160xbf16, #tpu.memory_space<vmem>>, %arg3: memref<1x160xf32, #tpu.memory_space<vmem>>, %arg4: memref<160x256xbf16, #tpu.memory_space<vmem>>, %arg5: memref<1x256xf32, #tpu.memory_space<vmem>>, %arg6: memref<256x256xbf16, #tpu.memory_space<vmem>>, %arg7: memref<1x256xf32, #tpu.memory_space<vmem>>, %arg8: memref<256x128xbf16, #tpu.memory_space<vmem>>, %arg9: memref<1x128xf32, #tpu.memory_space<vmem>>, %arg10: memref<8x128xf32, #tpu.memory_space<vmem>>) attributes {dimension_semantics = [#tpu.dimension_semantics<parallel>], iteration_bounds = array<i64: 1>, scalar_prefetch = 0 : i64, scratch_operands = 0 : i64, tpu.core_type = #tpu.core_type<tc>, window_params = [{transform_indices = @transform_0, window_bounds = array<i64: 8, 48>}, {pipeline_mode = #tpu.pipeline_mode<synchronous>, transform_indices = @transform_1, window_bounds = array<i64: 48, 160>}, {pipeline_mode = #tpu.pipeline_mode<synchronous>, transform_indices = @transform_2, window_bounds = array<i64: 1, 160>}, {pipeline_mode = #tpu.pipeline_mode<synchronous>, transform_indices = @transform_3, window_bounds = array<i64: 160, 256>}, {pipeline_mode = #tpu.pipeline_mode<synchronous>, transform_indices = @transform_4, window_bounds = array<i64: 1, 256>}, {pipeline_mode = #tpu.pipeline_mode<synchronous>, transform_indices = @transform_5, window_bounds = array<i64: 256, 256>}, {pipeline_mode = #tpu.pipeline_mode<synchronous>, transform_indices = @transform_6, window_bounds = array<i64: 1, 256>}, {pipeline_mode = #tpu.pipeline_mode<synchronous>, transform_indices = @transform_7, window_bounds = array<i64: 256, 128>}, {pipeline_mode = #tpu.pipeline_mode<synchronous>, transform_indices = @transform_8, window_bounds = array<i64: 1, 128>}, {transform_indices = @transform_9, window_bounds = array<i64: 8, 128>}]} {
    %c0 = arith.constant 0 : index
    %c0_0 = arith.constant 0 : index
    %0 = vector.load %arg1[%c0, %c0_0] : memref<8x48xbf16, #tpu.memory_space<vmem>>, vector<8x48xbf16>
    %c0_1 = arith.constant 0 : index
    %c0_2 = arith.constant 0 : index
    %1 = vector.load %arg2[%c0_1, %c0_2] : memref<48x160xbf16, #tpu.memory_space<vmem>>, vector<48x160xbf16>
    %cst = arith.constant dense<0.000000e+00> : vector<8x160xf32>
    %2 = tpu.matmul %0, %1, %cst {dimension_numbers = #tpu.dot_dimension_numbers<[1], [0], [0], [1], [0, 0, 1, 1], [], []>} : vector<8x48xbf16>, vector<48x160xbf16>, vector<8x160xf32> -> vector<8x160xf32>
    %c0_3 = arith.constant 0 : index
    %c0_4 = arith.constant 0 : index
    %3 = vector.load %arg3[%c0_3, %c0_4] : memref<1x160xf32, #tpu.memory_space<vmem>>, vector<1x160xf32>
    %4 = vector.broadcast %3 : vector<1x160xf32> to vector<8x160xf32>
    %5 = arith.addf %2, %4 : vector<8x160xf32>
    %cst_5 = arith.constant 0.000000e+00 : f32
    %6 = vector.broadcast %cst_5 : f32 to vector<8x160xf32>
    %7 = arith.maximumf %5, %6 : vector<8x160xf32>
    %8 = arith.truncf %7 : vector<8x160xf32> to vector<8x160xbf16>
    %c0_6 = arith.constant 0 : index
    %c0_7 = arith.constant 0 : index
    %9 = vector.load %arg4[%c0_6, %c0_7] : memref<160x256xbf16, #tpu.memory_space<vmem>>, vector<160x256xbf16>
    %cst_8 = arith.constant dense<0.000000e+00> : vector<8x256xf32>
    %10 = tpu.matmul %8, %9, %cst_8 {dimension_numbers = #tpu.dot_dimension_numbers<[1], [0], [0], [1], [0, 0, 1, 1], [], []>} : vector<8x160xbf16>, vector<160x256xbf16>, vector<8x256xf32> -> vector<8x256xf32>
    %c0_9 = arith.constant 0 : index
    %c0_10 = arith.constant 0 : index
    %11 = vector.load %arg5[%c0_9, %c0_10] : memref<1x256xf32, #tpu.memory_space<vmem>>, vector<1x256xf32>
    %12 = vector.broadcast %11 : vector<1x256xf32> to vector<8x256xf32>
    %13 = arith.addf %10, %12 : vector<8x256xf32>
    %14 = arith.truncf %13 : vector<8x256xf32> to vector<8x256xbf16>
    %c0_11 = arith.constant 0 : index
    %c0_12 = arith.constant 0 : index
    %15 = vector.load %arg6[%c0_11, %c0_12] : memref<256x256xbf16, #tpu.memory_space<vmem>>, vector<256x256xbf16>
    %cst_13 = arith.constant dense<0.000000e+00> : vector<8x256xf32>
    %16 = tpu.matmul %14, %15, %cst_13 {dimension_numbers = #tpu.dot_dimension_numbers<[1], [0], [0], [1], [0, 0, 1, 1], [], []>} : vector<8x256xbf16>, vector<256x256xbf16>, vector<8x256xf32> -> vector<8x256xf32>
    %c0_14 = arith.constant 0 : index
    %c0_15 = arith.constant 0 : index
    %17 = vector.load %arg7[%c0_14, %c0_15] : memref<1x256xf32, #tpu.memory_space<vmem>>, vector<1x256xf32>
    %18 = vector.broadcast %17 : vector<1x256xf32> to vector<8x256xf32>
    %19 = arith.addf %16, %18 : vector<8x256xf32>
    %cst_16 = arith.constant 0.000000e+00 : f32
    %20 = vector.broadcast %cst_16 : f32 to vector<8x256xf32>
    %21 = arith.maximumf %19, %20 : vector<8x256xf32>
    %22 = arith.truncf %21 : vector<8x256xf32> to vector<8x256xbf16>
    %c0_17 = arith.constant 0 : index
    %c0_18 = arith.constant 0 : index
    %23 = vector.load %arg8[%c0_17, %c0_18] : memref<256x128xbf16, #tpu.memory_space<vmem>>, vector<256x128xbf16>
    %cst_19 = arith.constant dense<0.000000e+00> : vector<8x128xf32>
    %24 = tpu.matmul %22, %23, %cst_19 {dimension_numbers = #tpu.dot_dimension_numbers<[1], [0], [0], [1], [0, 0, 1, 1], [], []>} : vector<8x256xbf16>, vector<256x128xbf16>, vector<8x128xf32> -> vector<8x128xf32>
    %c0_20 = arith.constant 0 : index
    %c0_21 = arith.constant 0 : index
    %25 = vector.load %arg9[%c0_20, %c0_21] : memref<1x128xf32, #tpu.memory_space<vmem>>, vector<1x128xf32>
    %26 = vector.broadcast %25 : vector<1x128xf32> to vector<8x128xf32>
    %27 = arith.addf %24, %26 : vector<8x128xf32>
    %c0_22 = arith.constant 0 : index
    %c0_23 = arith.constant 0 : index
    %28 = vector.load %arg10[%c0_22, %c0_23] : memref<8x128xf32, #tpu.memory_space<vmem>>, vector<8x128xf32>
    tpu.vector_store %arg10[%c0_22, %c0_23], %27 {strides = array<i32>} : memref<8x128xf32, #tpu.memory_space<vmem>>, vector<8x128xf32>,
    return
  }
  func.func @transform_0(%arg0: i32) -> (i32, i32) {
    %c0_i32 = arith.constant 0 : i32
    %c0_i32_0 = arith.constant 0 : i32
    return %arg0, %c0_i32 : i32, i32
  }
  func.func @transform_1(%arg0: i32) -> (i32, i32) {
    %c0_i32 = arith.constant 0 : i32
    %c0_i32_0 = arith.constant 0 : i32
    %c0_i32_1 = arith.constant 0 : i32
    return %c0_i32, %c0_i32_0 : i32, i32
  }
  func.func @transform_2(%arg0: i32) -> (i32, i32) {
    %c0_i32 = arith.constant 0 : i32
    %c0_i32_0 = arith.constant 0 : i32
    %c0_i32_1 = arith.constant 0 : i32
    return %c0_i32, %c0_i32_0 : i32, i32
  }
  func.func @transform_3(%arg0: i32) -> (i32, i32) {
    %c0_i32 = arith.constant 0 : i32
    %c0_i32_0 = arith.constant 0 : i32
    %c0_i32_1 = arith.constant 0 : i32
    return %c0_i32, %c0_i32_0 : i32, i32
  }
  func.func @transform_4(%arg0: i32) -> (i32, i32) {
    %c0_i32 = arith.constant 0 : i32
    %c0_i32_0 = arith.constant 0 : i32
    %c0_i32_1 = arith.constant 0 : i32
    return %c0_i32, %c0_i32_0 : i32, i32
  }
  func.func @transform_5(%arg0: i32) -> (i32, i32) {
    %c0_i32 = arith.constant 0 : i32
    %c0_i32_0 = arith.constant 0 : i32
    %c0_i32_1 = arith.constant 0 : i32
    return %c0_i32, %c0_i32_0 : i32, i32
  }
  func.func @transform_6(%arg0: i32) -> (i32, i32) {
    %c0_i32 = arith.constant 0 : i32
    %c0_i32_0 = arith.constant 0 : i32
    %c0_i32_1 = arith.constant 0 : i32
    return %c0_i32, %c0_i32_0 : i32, i32
  }
  func.func @transform_7(%arg0: i32) -> (i32, i32) {
    %c0_i32 = arith.constant 0 : i32
    %c0_i32_0 = arith.constant 0 : i32
    %c0_i32_1 = arith.constant 0 : i32
    return %c0_i32, %c0_i32_0 : i32, i32
  }
  func.func @transform_8(%arg0: i32) -> (i32, i32) {
    %c0_i32 = arith.constant 0 : i32
    %c0_i32_0 = arith.constant 0 : i32
    %c0_i32_1 = arith.constant 0 : i32
    return %c0_i32, %c0_i32_0 : i32, i32
  }
  func.func @transform_9(%arg0: i32) -> (i32, i32) {
    %c0_i32 = arith.constant 0 : i32
    %c0_i32_0 = arith.constant 0 : i32
    return %arg0, %c0_i32 : i32, i32
  }
}

</mosaic_0001>

<llo_original>
// kernel: tpu_custom_call.1
$region0: #{tpu_custom_call.1}
  #allocation0 [shape = 'u32[]', space=smem, size = 0x4, offset = 0x4, fixed_abs, tag = 'smem constant byte address 0x4 - core index']
  #allocation1 [shape = 'u32[72,128]{1,0:T(1,128)}', space=vmem, size = 0x9000, scoped, tag = 'internal scratch']
  %s0 = inlined_call_operand.hbm [shape: bf16[8,48], index: 0, kind: input, shape index: {}]
  %s1 = inlined_call_operand.hbm [shape: bf16[48,160], index: 1, kind: input, shape index: {}]
  %s2 = inlined_call_operand.hbm [shape: f32[1,160], index: 2, kind: input, shape index: {}]
  %s3 = inlined_call_operand.hbm [shape: bf16[160,256], index: 3, kind: input, shape index: {}]
  %s4 = inlined_call_operand.vmem [shape: f32[1,256], index: 4, kind: input, shape index: {}]
  %s5 = inlined_call_operand.hbm [shape: bf16[256,256], index: 5, kind: input, shape index: {}]
  %s6 = inlined_call_operand.vmem [shape: f32[1,256], index: 6, kind: input, shape index: {}]
  %s7 = inlined_call_operand.hbm [shape: bf16[256,128], index: 7, kind: input, shape index: {}]
  %s8 = inlined_call_operand.vmem [shape: f32[1,128], index: 8, kind: input, shape index: {}]
  %s9 = inlined_call_operand.hbm [shape: f32[8,128], index: 9, kind: output, shape index: {}]
  %s10 = sld [smem:[#allocation0]]
  $region70: #{tpu_custom_call.1} parent=0
    _
  %s12 = ssub.s32 1, %s10
  %s13 = scalar_select 0, %s12, %s10
  $region1: #{tpu_custom_call.1} parent=0
    #allocation2 [shape = 'u8[2048]{0}', space=vmem, size = 0x800, scoped, tag = 'input window, operand 0, single buffered']
    #allocation3 [shape = 's32[1]{0}', space=sflag, size = 0x4, scoped, tag = 'scoped memory for tpu_custom_call.1']
    #allocation4 [shape = 's32[1]{0}', space=sflag, size = 0x4, scoped, tag = 'scoped memory for tpu_custom_call.1']
    #allocation5 [shape = 'u8[24576]{0}', space=vmem, size = 0x6000, scoped, tag = 'input window, operand 1, single buffered']
    #allocation6 [shape = 's32[1]{0}', space=sflag, size = 0x4, scoped, tag = 'scoped memory for tpu_custom_call.1']
    #allocation7 [shape = 'u8[1024]{0}', space=vmem, size = 0x400, scoped, tag = 'input window, operand 2, single buffered']
    #allocation8 [shape = 'u8[81920]{0}', space=vmem, size = 0x14000, scoped, tag = 'input window, operand 3, single buffered']
    #allocation9 [shape = 's32[1]{0}', space=sflag, size = 0x4, scoped, tag = 'scoped memory for tpu_custom_call.1']
    #allocation10 [shape = 'u8[131072]{0}', space=vmem, size = 0x20000, scoped, tag = 'input window, operand 5, single buffered']
    #allocation11 [shape = 'u8[65536]{0}', space=vmem, size = 0x10000, scoped, tag = 'input window, operand 7, single buffered']
    #allocation12 [shape = 's32[1]{0}', space=sflag, size = 0x4, scoped, tag = 'scoped memory for tpu_custom_call.1']
    #allocation13 [shape = 'u8[4096]{0}', space=vmem, size = 0x1000, scoped, tag = 'output window, operand 0, single buffered']
    %14 = vsyncpa [#allocation3], 0
    %15 = vsyncpa [#allocation6], 0
    %16 = vsyncpa [#allocation9], 0
    %17 = vsyncpa [#allocation12], 0
    %18 = vsyncpa [#allocation4], 0
    // Predicated region
    $region2: #{tpu_custom_call.1} parent=1 // pred_check
      _
    $region3: #{tpu_custom_call.1} parent=1 // pred_check_branch
      %20 = sbr.rel (0) target = $region5
    $region4: #{tpu_custom_call.1} parent=1 // pred_region
      %22 = vsyncadd [#allocation3], 0
      %s24 = sshll.u32 %s0, 4
      %s25 = int_to_ptr.hbm [resolvable:$true] %s24
      %s26 = sshll.u32 [#allocation2], 4
      %s27 = int_to_ptr.vmem [resolvable:$true] %s26
      %29 = dma.hbm_to_vmem [thread:$0]  %s25, 64, %s27, [#allocation3]
    $region5: #{tpu_custom_call.1} parent=1 // pred_fallthru
      _
    // Predicated region
    $region6: #{tpu_custom_call.1} parent=1 // pred_check
      _
    $region7: #{tpu_custom_call.1} parent=1 // pred_check_branch
      %31 = sbr.rel (0) target = $region9
    $region8: #{tpu_custom_call.1} parent=1 // pred_region
      %33 = vsyncadd [#allocation6], 0
      %s34 = sshll.u32 %s1, 4
      %s35 = int_to_ptr.hbm [resolvable:$true] %s34
      %s36 = sshll.u32 [#allocation5], 4
      %s37 = int_to_ptr.vmem [resolvable:$true] %s36
      %42 = dma.hbm_to_vmem [thread:$0]  %s35, 768, %s37, [#allocation6], 128, 128, 8
    $region9: #{tpu_custom_call.1} parent=1 // pred_fallthru
      _
    // Predicated region
    $region10: #{tpu_custom_call.1} parent=1 // pred_check
      _
    $region11: #{tpu_custom_call.1} parent=1 // pred_check_branch
      %44 = sbr.rel (0) target = $region13
    $region12: #{tpu_custom_call.1} parent=1 // pred_region
      %46 = vsyncadd [#allocation6], 0
      %s48 = sshll.u32 %s2, 4
      %s49 = int_to_ptr.hbm [resolvable:$true] %s48
      %s50 = sshll.u32 [#allocation7], 4
      %s51 = int_to_ptr.vmem [resolvable:$true] %s50
      %53 = dma.hbm_to_vmem [thread:$0]  %s49, 32, %s51, [#allocation6]
    $region13: #{tpu_custom_call.1} parent=1 // pred_fallthru
      _
    // Predicated region
    $region14: #{tpu_custom_call.1} parent=1 // pred_check
      _
    $region15: #{tpu_custom_call.1} parent=1 // pred_check_branch
      %55 = sbr.rel (0) target = $region17
    $region16: #{tpu_custom_call.1} parent=1 // pred_region
      %57 = vsyncadd [#allocation9], 0
      %s58 = sshll.u32 %s3, 4
      %s59 = int_to_ptr.hbm [resolvable:$true] %s58
      %s60 = sshll.u32 [#allocation8], 4
      %s61 = int_to_ptr.vmem [resolvable:$true] %s60
      %66 = dma.hbm_to_vmem [thread:$0]  %s59, 2560, %s61, [#allocation9], 128, 128, 8
    $region17: #{tpu_custom_call.1} parent=1 // pred_fallthru
      _
    // Predicated region
    $region18: #{tpu_custom_call.1} parent=1 // pred_check
      _
    $region19: #{tpu_custom_call.1} parent=1 // pred_check_branch
      %68 = sbr.rel (0) target = $region21
    $region20: #{tpu_custom_call.1} parent=1 // pred_region
      _
    $region21: #{tpu_custom_call.1} parent=1 // pred_fallthru
      _
    // Predicated region
    $region22: #{tpu_custom_call.1} parent=1 // pred_check
      _
    $region23: #{tpu_custom_call.1} parent=1 // pred_check_branch
      %70 = sbr.rel (0) target = $region25
    $region24: #{tpu_custom_call.1} parent=1 // pred_region
      %72 = vsyncadd [#allocation9], 0
      %s73 = sshll.u32 %s5, 4
      %s74 = int_to_ptr.hbm [resolvable:$true] %s73
      %s75 = sshll.u32 [#allocation10], 4
      %s76 = int_to_ptr.vmem [resolvable:$true] %s75
      %81 = dma.hbm_to_vmem [thread:$0]  %s74, 4096, %s76, [#allocation9], 128, 128, 8
    $region25: #{tpu_custom_call.1} parent=1 // pred_fallthru
      _
    // Predicated region
    $region26: #{tpu_custom_call.1} parent=1 // pred_check
      _
    $region27: #{tpu_custom_call.1} parent=1 // pred_check_branch
      %83 = sbr.rel (0) target = $region29
    $region28: #{tpu_custom_call.1} parent=1 // pred_region
      _
    $region29: #{tpu_custom_call.1} parent=1 // pred_fallthru
      _
    // Predicated region
    $region30: #{tpu_custom_call.1} parent=1 // pred_check
      _
    $region31: #{tpu_custom_call.1} parent=1 // pred_check_branch
      %85 = sbr.rel (0) target = $region33
    $region32: #{tpu_custom_call.1} parent=1 // pred_region
      %87 = vsyncadd [#allocation12], 0
      %s88 = sshll.u32 %s7, 4
      %s89 = int_to_ptr.hbm [resolvable:$true] %s88
      %s90 = sshll.u32 [#allocation11], 4
      %s91 = int_to_ptr.vmem [resolvable:$true] %s90
      %96 = dma.hbm_to_vmem [thread:$0]  %s89, 2048, %s91, [#allocation12], 64, 64, 4
    $region33: #{tpu_custom_call.1} parent=1 // pred_fallthru
      _
    // Predicated region
    $region34: #{tpu_custom_call.1} parent=1 // pred_check
      _
    $region35: #{tpu_custom_call.1} parent=1 // pred_check_branch
      %98 = sbr.rel (0) target = $region37
    $region36: #{tpu_custom_call.1} parent=1 // pred_region
      _
    $region37: #{tpu_custom_call.1} parent=1 // pred_fallthru
      _
    // Predicated region
    $region38: #{tpu_custom_call.1} parent=1 // pred_check
      _
    $region39: #{tpu_custom_call.1} parent=1 // pred_check_branch
      %100 = sbr.rel (0) target = $region41
    $region40: #{tpu_custom_call.1} parent=1 // pred_region
      %102 = dma.done [#allocation3], 64
    $region41: #{tpu_custom_call.1} parent=1 // pred_fallthru
      _
    // Predicated region
    $region42: #{tpu_custom_call.1} parent=1 // pred_check
      _
    $region43: #{tpu_custom_call.1} parent=1 // pred_check_branch
      %104 = sbr.rel (0) target = $region45
    $region44: #{tpu_custom_call.1} parent=1 // pred_region
      %106 = dma.done [#allocation6], 768
    $region45: #{tpu_custom_call.1} parent=1 // pred_fallthru
      _
    // Predicated region
    $region46: #{tpu_custom_call.1} parent=1 // pred_check
      _
    $region47: #{tpu_custom_call.1} parent=1 // pred_check_branch
      %108 = sbr.rel (0) target = $region49
    $region48: #{tpu_custom_call.1} parent=1 // pred_region
      %110 = dma.done [#allocation6], 32
    $region49: #{tpu_custom_call.1} parent=1 // pred_fallthru
      _
    // Predicated region
    $region50: #{tpu_custom_call.1} parent=1 // pred_check
      _
    $region51: #{tpu_custom_call.1} parent=1 // pred_check_branch
      %112 = sbr.rel (0) target = $region53
    $region52: #{tpu_custom_call.1} parent=1 // pred_region
      %114 = dma.done [#allocation9], 2560
    $region53: #{tpu_custom_call.1} parent=1 // pred_fallthru
      _
    // Predicated region
    $region54: #{tpu_custom_call.1} parent=1 // pred_check
      _
    $region55: #{tpu_custom_call.1} parent=1 // pred_check_branch
      %116 = sbr.rel (0) target = $region57
    $region56: #{tpu_custom_call.1} parent=1 // pred_region
      %118 = dma.done [#allocation9], 4096
    $region57: #{tpu_custom_call.1} parent=1 // pred_fallthru
      _
    // Predicated region
    $region58: #{tpu_custom_call.1} parent=1 // pred_check
      _
    $region59: #{tpu_custom_call.1} parent=1 // pred_check_branch
      %120 = sbr.rel (0) target = $region61
    $region60: #{tpu_custom_call.1} parent=1 // pred_region
      %122 = dma.done [#allocation12], 2048
    $region61: #{tpu_custom_call.1} parent=1 // pred_fallthru
      _
    %v124 = vld [vmem:[#allocation2] sm:$0xf]
    %v125 = vld [vmem:[#allocation5] sm:$0xff]
    %v126 = vld [vmem:[#allocation5 + $0x8] sm:$0xff]
    %v127 = vld [vmem:[#allocation5 + $0x10] sm:$0xff]
    %v128 = vld [vmem:[#allocation5 + $0x18] sm:$0xff]
    %v129 = vld [vmem:[#allocation5 + $0x20] sm:$0xff]
    %v130 = vld [vmem:[#allocation5 + $0x28] sm:$0xff]
    %v131 = vld [vmem:[#allocation7] sm:$0x3]
    %v133 = vperm.slane %v131, 0
    %v134 = vperm.slane %v131, 1
    %v143 = vunpack.c.l.b16 %v125
    %v144 = vunpack.c.h.b16 %v125
    %v145 = vunpack.c.l.b16 %v126
    %v146 = vunpack.c.h.b16 %v126
    %v147 = vunpack.c.l.b16 %v127
    %v148 = vunpack.c.h.b16 %v127
    %v149 = vunpack.c.l.b16 %v128
    %v150 = vunpack.c.h.b16 %v128
    %v151 = vunpack.c.l.b16 %v129
    %v152 = vunpack.c.h.b16 %v129
    %v153 = vunpack.c.l.b16 %v130
    %v154 = vunpack.c.h.b16 %v130
    %v155 = vpack.c.b16 %v145, %v143
    %v156 = vpack.c.b16 %v146, %v144
    %v157 = vpack.c.b16 %v149, %v147
    %v158 = vpack.c.b16 %v150, %v148
    %v159 = vpack.c.b16 %v153, %v151
    %v160 = vpack.c.b16 %v154, %v152
    %vm167 = vcmask 392192
    %v169 = vsel %vm167, %v124, 0
    %171 = vmatpush.bf16.msra.mxu0 0
    %172 = vmatpush.bf16.msra.mxu0 0
    %173 = vmatpush.bf16.msra.mxu0 0
    %174 = vmatpush.bf16.msra.mxu0 0
    %175 = vmatpush.bf16.msra.mxu0 0
    %176 = vmatpush.bf16.msra.mxu0 %v159
    %177 = vmatpush.bf16.msra.mxu0 %v157
    %178 = vmatpush.bf16.msra.mxu0 %v155
    %179 = vmatmul.bf16.gmra.mxu0 %v169
    %v180 = vpop.f32.mrf.mxu0
    %v181 = vadd.f32 %v133, %v180
    %v182 = vpop.f32.mrf.mxu0
    %183 = vdwg.mxu0
    %184 = vmatpush.bf16.msra.mxu0 0
    %185 = vmatpush.bf16.msra.mxu0 0
    %186 = vmatpush.bf16.msra.mxu0 0
    %187 = vmatpush.bf16.msra.mxu0 0
    %188 = vmatpush.bf16.msra.mxu0 0
    %189 = vmatpush.bf16.msra.mxu0 %v160
    %190 = vmatpush.bf16.msra.mxu0 %v158
    %191 = vmatpush.bf16.msra.mxu0 %v156
    %192 = vmatmul.bf16.gmra.mxu0 %v169
    %v193 = vpop.f32.mrf.mxu0
    %v194 = vadd.f32 %v134, %v193
    %v195 = vpop.f32.mrf.mxu0
    %196 = vdwg.mxu0
    %v197 = vmax.f32 %v181, 0.0
    %v198 = vmax.f32 %v194, 0.0
    %v199 = vpack.c.bf16 %v197, %v197
    %v200 = vpack.c.bf16 %v198, %v198
    %v201 = vld [vmem:[#allocation8] sm:$0xff]
    %v202 = vld [vmem:[#allocation8 + $0x8] sm:$0xff]
    %v203 = vld [vmem:[#allocation8 + $0x10] sm:$0xff]
    %v204 = vld [vmem:[#allocation8 + $0x18] sm:$0xff]
    %v205 = vld [vmem:[#allocation8 + $0x20] sm:$0xff]
    %v206 = vld [vmem:[#allocation8 + $0x28] sm:$0xff]
    %v207 = vld [vmem:[#allocation8 + $0x30] sm:$0xff]
    %v208 = vld [vmem:[#allocation8 + $0x38] sm:$0xff]
    %v209 = vld [vmem:[#allocation8 + $0x40] sm:$0xff]
    %v210 = vld [vmem:[#allocation8 + $0x48] sm:$0xff]
    %v211 = vld [vmem:[#allocation8 + $0x50] sm:$0xff]
    %v212 = vld [vmem:[#allocation8 + $0x58] sm:$0xff]
    %v213 = vld [vmem:[#allocation8 + $0x60] sm:$0xff]
    %v214 = vld [vmem:[#allocation8 + $0x68] sm:$0xff]
    %v215 = vld [vmem:[#allocation8 + $0x70] sm:$0xff]
    %v216 = vld [vmem:[#allocation8 + $0x78] sm:$0xff]
    %v217 = vld [vmem:[#allocation8 + $0x80] sm:$0xff]
    %v218 = vld [vmem:[#allocation8 + $0x88] sm:$0xff]
    %v219 = vld [vmem:[#allocation8 + $0x90] sm:$0xff]
    %v220 = vld [vmem:[#allocation8 + $0x98] sm:$0xff]
    %v221 = vld [vmem:[%s4] sm:$0x3]
    %v223 = vperm.slane %v221, 0
    %v224 = vperm.slane %v221, 1
    %v247 = vunpack.c.l.b16 %v201
    %v248 = vunpack.c.h.b16 %v201
    %v249 = vunpack.c.l.b16 %v202
    %v250 = vunpack.c.h.b16 %v202
    %v251 = vunpack.c.l.b16 %v203
    %v252 = vunpack.c.h.b16 %v203
    %v253 = vunpack.c.l.b16 %v204
    %v254 = vunpack.c.h.b16 %v204
    %v255 = vunpack.c.l.b16 %v205
    %v256 = vunpack.c.h.b16 %v205
    %v257 = vunpack.c.l.b16 %v206
    %v258 = vunpack.c.h.b16 %v206
    %v259 = vunpack.c.l.b16 %v207
    %v260 = vunpack.c.h.b16 %v207
    %v261 = vunpack.c.l.b16 %v208
    %v262 = vunpack.c.h.b16 %v208
    %v263 = vunpack.c.l.b16 %v209
    %v264 = vunpack.c.h.b16 %v209
    %v265 = vunpack.c.l.b16 %v210
    %v266 = vunpack.c.h.b16 %v210
    %v267 = vunpack.c.l.b16 %v211
    %v268 = vunpack.c.h.b16 %v211
    %v269 = vunpack.c.l.b16 %v212
    %v270 = vunpack.c.h.b16 %v212
    %v271 = vunpack.c.l.b16 %v213
    %v272 = vunpack.c.h.b16 %v213
    %v273 = vunpack.c.l.b16 %v214
    %v274 = vunpack.c.h.b16 %v214
    %v275 = vunpack.c.l.b16 %v215
    %v276 = vunpack.c.h.b16 %v215
    %v277 = vunpack.c.l.b16 %v216
    %v278 = vunpack.c.h.b16 %v216
    %v279 = vunpack.c.l.b16 %v217
    %v280 = vunpack.c.h.b16 %v217
    %v281 = vunpack.c.l.b16 %v218
    %v282 = vunpack.c.h.b16 %v218
    %v283 = vunpack.c.l.b16 %v219
    %v284 = vunpack.c.h.b16 %v219
    %v285 = vunpack.c.l.b16 %v220
    %v286 = vunpack.c.h.b16 %v220
    %v287 = vpack.c.b16 %v249, %v247
    %v288 = vpack.c.b16 %v250, %v248
    %v289 = vpack.c.b16 %v253, %v251
    %v290 = vpack.c.b16 %v254, %v252
    %v291 = vpack.c.b16 %v257, %v255
    %v292 = vpack.c.b16 %v258, %v256
    %v293 = vpack.c.b16 %v261, %v259
    %v294 = vpack.c.b16 %v262, %v260
    %v295 = vpack.c.b16 %v265, %v263
    %v296 = vpack.c.b16 %v266, %v264
    %v297 = vpack.c.b16 %v269, %v267
    %v298 = vpack.c.b16 %v270, %v268
    %v299 = vpack.c.b16 %v273, %v271
    %v300 = vpack.c.b16 %v274, %v272
    %v301 = vpack.c.b16 %v277, %v275
    %v302 = vpack.c.b16 %v278, %v276
    %v303 = vpack.c.b16 %v281, %v279
    %v304 = vpack.c.b16 %v282, %v280
    %v305 = vpack.c.b16 %v285, %v283
    %v306 = vpack.c.b16 %v286, %v284
    %vm327 = vcmask 261120
    %v329 = vsel %vm327, %v200, 0
    %331 = vmatpush.bf16.msra.mxu0 %v301
    %332 = vmatpush.bf16.msra.mxu0 %v299
    %333 = vmatpush.bf16.msra.mxu0 %v297
    %334 = vmatpush.bf16.msra.mxu0 %v295
    %335 = vmatpush.bf16.msra.mxu0 %v293
    %336 = vmatpush.bf16.msra.mxu0 %v291
    %337 = vmatpush.bf16.msra.mxu0 %v289
    %338 = vmatpush.bf16.msra.mxu0 %v287
    %339 = vmatmul.bf16.gmra.mxu0 %v199
    %v340 = vpop.f32.mrf.mxu0
    %v341 = vadd.f32 %v223, %v340
    %v342 = vpop.f32.mrf.mxu0
    %343 = vdwg.mxu0
    %344 = vmatpush.bf16.msra.mxu0 0
    %345 = vmatpush.bf16.msra.mxu0 0
    %346 = vmatpush.bf16.msra.mxu0 0
    %347 = vmatpush.bf16.msra.mxu0 0
    %348 = vmatpush.bf16.msra.mxu0 0
    %349 = vmatpush.bf16.msra.mxu0 0
    %350 = vmatpush.bf16.msra.mxu0 %v305
    %351 = vmatpush.bf16.msra.mxu0 %v303
    %352 = vmatmul.bf16.gmra.mxu0 %v329
    %v353 = vpop.f32.mrf.mxu0
    %v354 = vadd.f32 %v341, %v353
    %v355 = vpop.f32.mrf.mxu0
    %356 = vdwg.mxu0
    %357 = vmatpush.bf16.msra.mxu0 %v302
    %358 = vmatpush.bf16.msra.mxu0 %v300
    %359 = vmatpush.bf16.msra.mxu0 %v298
    %360 = vmatpush.bf16.msra.mxu0 %v296
    %361 = vmatpush.bf16.msra.mxu0 %v294
    %362 = vmatpush.bf16.msra.mxu0 %v292
    %363 = vmatpush.bf16.msra.mxu0 %v290
    %364 = vmatpush.bf16.msra.mxu0 %v288
    %365 = vmatmul.bf16.gmra.mxu0 %v199
    %v366 = vpop.f32.mrf.mxu0
    %v367 = vadd.f32 %v224, %v366
    %v368 = vpop.f32.mrf.mxu0
    %369 = vdwg.mxu0
    %370 = vmatpush.bf16.msra.mxu0 0
    %371 = vmatpush.bf16.msra.mxu0 0
    %372 = vmatpush.bf16.msra.mxu0 0
    %373 = vmatpush.bf16.msra.mxu0 0
    %374 = vmatpush.bf16.msra.mxu0 0
    %375 = vmatpush.bf16.msra.mxu0 0
    %376 = vmatpush.bf16.msra.mxu0 %v306
    %377 = vmatpush.bf16.msra.mxu0 %v304
    %378 = vmatmul.bf16.gmra.mxu0 %v329
    %v379 = vpop.f32.mrf.mxu0
    %v380 = vadd.f32 %v367, %v379
    %v381 = vpop.f32.mrf.mxu0
    %382 = vdwg.mxu0
    %v383 = vpack.c.bf16 %v354, %v354
    %v384 = vpack.c.bf16 %v380, %v380
    %v385 = vld [vmem:[#allocation10] sm:$0xff]
    %v386 = vld [vmem:[#allocation10 + $0x8] sm:$0xff]
    %v387 = vld [vmem:[#allocation10 + $0x10] sm:$0xff]
    %v388 = vld [vmem:[#allocation10 + $0x18] sm:$0xff]
    %v389 = vld [vmem:[#allocation10 + $0x20] sm:$0xff]
    %v390 = vld [vmem:[#allocation10 + $0x28] sm:$0xff]
    %v391 = vld [vmem:[#allocation10 + $0x30] sm:$0xff]
    %v392 = vld [vmem:[#allocation10 + $0x38] sm:$0xff]
    %v393 = vld [vmem:[#allocation10 + $0x40] sm:$0xff]
    %v394 = vld [vmem:[#allocation10 + $0x48] sm:$0xff]
    %v395 = vld [vmem:[#allocation10 + $0x50] sm:$0xff]
    %v396 = vld [vmem:[#allocation10 + $0x58] sm:$0xff]
    %v397 = vld [vmem:[#allocation10 + $0x60] sm:$0xff]
    %v398 = vld [vmem:[#allocation10 + $0x68] sm:$0xff]
    %v399 = vld [vmem:[#allocation10 + $0x70] sm:$0xff]
    %v400 = vld [vmem:[#allocation10 + $0x78] sm:$0xff]
    %v401 = vld [vmem:[#allocation10 + $0x80] sm:$0xff]
    %v402 = vld [vmem:[#allocation10 + $0x88] sm:$0xff]
    %v403 = vld [vmem:[#allocation10 + $0x90] sm:$0xff]
    %v404 = vld [vmem:[#allocation10 + $0x98] sm:$0xff]
    %v405 = vld [vmem:[#allocation10 + $0xa0] sm:$0xff]
    %v406 = vld [vmem:[#allocation10 + $0xa8] sm:$0xff]
    %v407 = vld [vmem:[#allocation10 + $0xb0] sm:$0xff]
    %v408 = vld [vmem:[#allocation10 + $0xb8] sm:$0xff]
    %v409 = vld [vmem:[#allocation10 + $0xc0] sm:$0xff]
    %v410 = vld [vmem:[#allocation10 + $0xc8] sm:$0xff]
    %v411 = vld [vmem:[#allocation10 + $0xd0] sm:$0xff]
    %v412 = vld [vmem:[#allocation10 + $0xd8] sm:$0xff]
    %v413 = vld [vmem:[#allocation10 + $0xe0] sm:$0xff]
    %v414 = vld [vmem:[#allocation10 + $0xe8] sm:$0xff]
    %v415 = vld [vmem:[#allocation10 + $0xf0] sm:$0xff]
    %v416 = vld [vmem:[#allocation10 + $0xf8] sm:$0xff]
    %v417 = vld [vmem:[%s6] sm:$0x3]
    %v419 = vperm.slane %v417, 0
    %v420 = vperm.slane %v417, 1
    %v455 = vunpack.c.l.b16 %v385
    %v456 = vunpack.c.h.b16 %v385
    %v457 = vunpack.c.l.b16 %v386
    %v458 = vunpack.c.h.b16 %v386
    %v459 = vunpack.c.l.b16 %v387
    %v460 = vunpack.c.h.b16 %v387
    %v461 = vunpack.c.l.b16 %v388
    %v462 = vunpack.c.h.b16 %v388
    %v463 = vunpack.c.l.b16 %v389
    %v464 = vunpack.c.h.b16 %v389
    %v465 = vunpack.c.l.b16 %v390
    %v466 = vunpack.c.h.b16 %v390
    %v467 = vunpack.c.l.b16 %v391
    %v468 = vunpack.c.h.b16 %v391
    %v469 = vunpack.c.l.b16 %v392
    %v470 = vunpack.c.h.b16 %v392
    %v471 = vunpack.c.l.b16 %v393
    %v472 = vunpack.c.h.b16 %v393
    %v473 = vunpack.c.l.b16 %v394
    %v474 = vunpack.c.h.b16 %v394
    %v475 = vunpack.c.l.b16 %v395
    %v476 = vunpack.c.h.b16 %v395
    %v477 = vunpack.c.l.b16 %v396
    %v478 = vunpack.c.h.b16 %v396
    %v479 = vunpack.c.l.b16 %v397
    %v480 = vunpack.c.h.b16 %v397
    %v481 = vunpack.c.l.b16 %v398
    %v482 = vunpack.c.h.b16 %v398
    %v483 = vunpack.c.l.b16 %v399
    %v484 = vunpack.c.h.b16 %v399
    %v485 = vunpack.c.l.b16 %v400
    %v486 = vunpack.c.h.b16 %v400
    %v487 = vunpack.c.l.b16 %v401
    %v488 = vunpack.c.h.b16 %v401
    %v489 = vunpack.c.l.b16 %v402
    %v490 = vunpack.c.h.b16 %v402
    %v491 = vunpack.c.l.b16 %v403
    %v492 = vunpack.c.h.b16 %v403
    %v493 = vunpack.c.l.b16 %v404
    %v494 = vunpack.c.h.b16 %v404
    %v495 = vunpack.c.l.b16 %v405
    %v496 = vunpack.c.h.b16 %v405
    %v497 = vunpack.c.l.b16 %v406
    %v498 = vunpack.c.h.b16 %v406
    %v499 = vunpack.c.l.b16 %v407
    %v500 = vunpack.c.h.b16 %v407
    %v501 = vunpack.c.l.b16 %v408
    %v502 = vunpack.c.h.b16 %v408
    %v503 = vunpack.c.l.b16 %v409
    %v504 = vunpack.c.h.b16 %v409
    %v505 = vunpack.c.l.b16 %v410
    %v506 = vunpack.c.h.b16 %v410
    %v507 = vunpack.c.l.b16 %v411
    %v508 = vunpack.c.h.b16 %v411
    %v509 = vunpack.c.l.b16 %v412
    %v510 = vunpack.c.h.b16 %v412
    %v511 = vunpack.c.l.b16 %v413
    %v512 = vunpack.c.h.b16 %v413
    %v513 = vunpack.c.l.b16 %v414
    %v514 = vunpack.c.h.b16 %v414
    %v515 = vunpack.c.l.b16 %v415
    %v516 = vunpack.c.h.b16 %v415
    %v517 = vunpack.c.l.b16 %v416
    %v518 = vunpack.c.h.b16 %v416
    %v519 = vpack.c.b16 %v457, %v455
    %v520 = vpack.c.b16 %v458, %v456
    %v521 = vpack.c.b16 %v461, %v459
    %v522 = vpack.c.b16 %v462, %v460
    %v523 = vpack.c.b16 %v465, %v463
    %v524 = vpack.c.b16 %v466, %v464
    %v525 = vpack.c.b16 %v469, %v467
    %v526 = vpack.c.b16 %v470, %v468
    %v527 = vpack.c.b16 %v473, %v471
    %v528 = vpack.c.b16 %v474, %v472
    %v529 = vpack.c.b16 %v477, %v475
    %v530 = vpack.c.b16 %v478, %v476
    %v531 = vpack.c.b16 %v481, %v479
    %v532 = vpack.c.b16 %v482, %v480
    %v533 = vpack.c.b16 %v485, %v483
    %v534 = vpack.c.b16 %v486, %v484
    %v535 = vpack.c.b16 %v489, %v487
    %v536 = vpack.c.b16 %v490, %v488
    %v537 = vpack.c.b16 %v493, %v491
    %v538 = vpack.c.b16 %v494, %v492
    %v539 = vpack.c.b16 %v497, %v495
    %v540 = vpack.c.b16 %v498, %v496
    %v541 = vpack.c.b16 %v501, %v499
    %v542 = vpack.c.b16 %v502, %v500
    %v543 = vpack.c.b16 %v505, %v503
    %v544 = vpack.c.b16 %v506, %v504
    %v545 = vpack.c.b16 %v509, %v507
    %v546 = vpack.c.b16 %v510, %v508
    %v547 = vpack.c.b16 %v513, %v511
    %v548 = vpack.c.b16 %v514, %v512
    %v549 = vpack.c.b16 %v517, %v515
    %v550 = vpack.c.b16 %v518, %v516
    %583 = vmatpush.bf16.msra.mxu0 %v533
    %584 = vmatpush.bf16.msra.mxu0 %v531
    %585 = vmatpush.bf16.msra.mxu0 %v529
    %586 = vmatpush.bf16.msra.mxu0 %v527
    %587 = vmatpush.bf16.msra.mxu0 %v525
    %588 = vmatpush.bf16.msra.mxu0 %v523
    %589 = vmatpush.bf16.msra.mxu0 %v521
    %590 = vmatpush.bf16.msra.mxu0 %v519
    %591 = vmatmul.bf16.gmra.mxu0 %v383
    %v592 = vpop.f32.mrf.mxu0
    %v593 = vadd.f32 %v419, %v592
    %v594 = vpop.f32.mrf.mxu0
    %595 = vdwg.mxu0
    %596 = vmatpush.bf16.msra.mxu0 %v549
    %597 = vmatpush.bf16.msra.mxu0 %v547
    %598 = vmatpush.bf16.msra.mxu0 %v545
    %599 = vmatpush.bf16.msra.mxu0 %v543
    %600 = vmatpush.bf16.msra.mxu0 %v541
    %601 = vmatpush.bf16.msra.mxu0 %v539
    %602 = vmatpush.bf16.msra.mxu0 %v537
    %603 = vmatpush.bf16.msra.mxu0 %v535
    %604 = vmatmul.bf16.gmra.mxu0 %v384
    %v605 = vpop.f32.mrf.mxu0
    %v606 = vadd.f32 %v593, %v605
    %v607 = vpop.f32.mrf.mxu0
    %608 = vdwg.mxu0
    %609 = vmatpush.bf16.msra.mxu0 %v534
    %610 = vmatpush.bf16.msra.mxu0 %v532
    %611 = vmatpush.bf16.msra.mxu0 %v530
    %612 = vmatpush.bf16.msra.mxu0 %v528
    %613 = vmatpush.bf16.msra.mxu0 %v526
    %614 = vmatpush.bf16.msra.mxu0 %v524
    %615 = vmatpush.bf16.msra.mxu0 %v522
    %616 = vmatpush.bf16.msra.mxu0 %v520
    %617 = vmatmul.bf16.gmra.mxu0 %v383
    %v618 = vpop.f32.mrf.mxu0
    %v619 = vadd.f32 %v420, %v618
    %v620 = vpop.f32.mrf.mxu0
    %621 = vdwg.mxu0
    %622 = vmatpush.bf16.msra.mxu0 %v550
    %623 = vmatpush.bf16.msra.mxu0 %v548
    %624 = vmatpush.bf16.msra.mxu0 %v546
    %625 = vmatpush.bf16.msra.mxu0 %v544
    %626 = vmatpush.bf16.msra.mxu0 %v542
    %627 = vmatpush.bf16.msra.mxu0 %v540
    %628 = vmatpush.bf16.msra.mxu0 %v538
    %629 = vmatpush.bf16.msra.mxu0 %v536
    %630 = vmatmul.bf16.gmra.mxu0 %v384
    %v631 = vpop.f32.mrf.mxu0
    %v632 = vadd.f32 %v619, %v631
    %v633 = vpop.f32.mrf.mxu0
    %634 = vdwg.mxu0
    %v635 = vmax.f32 %v606, 0.0
    %v636 = vmax.f32 %v632, 0.0
    %v637 = vpack.c.bf16 %v635, %v635
    %v638 = vpack.c.bf16 %v636, %v636
    %v639 = vld [vmem:[#allocation11] sm:$0xf]
    %v640 = vld [vmem:[#allocation11 + $0x4] sm:$0xf]
    %v641 = vld [vmem:[#allocation11 + $0x8] sm:$0xf]
    %v642 = vld [vmem:[#allocation11 + $0xc] sm:$0xf]
    %v643 = vld [vmem:[#allocation11 + $0x10] sm:$0xf]
    %v644 = vld [vmem:[#allocation11 + $0x14] sm:$0xf]
    %v645 = vld [vmem:[#allocation11 + $0x18] sm:$0xf]
    %v646 = vld [vmem:[#allocation11 + $0x1c] sm:$0xf]
    %v647 = vld [vmem:[#allocation11 + $0x20] sm:$0xf]
    %v648 = vld [vmem:[#allocation11 + $0x24] sm:$0xf]
    %v649 = vld [vmem:[#allocation11 + $0x28] sm:$0xf]
    %v650 = vld [vmem:[#allocation11 + $0x2c] sm:$0xf]
    %v651 = vld [vmem:[#allocation11 + $0x30] sm:$0xf]
    %v652 = vld [vmem:[#allocation11 + $0x34] sm:$0xf]
    %v653 = vld [vmem:[#allocation11 + $0x38] sm:$0xf]
    %v654 = vld [vmem:[#allocation11 + $0x3c] sm:$0xf]
    %v655 = vld [vmem:[#allocation11 + $0x40] sm:$0xf]
    %v656 = vld [vmem:[#allocation11 + $0x44] sm:$0xf]
    %v657 = vld [vmem:[#allocation11 + $0x48] sm:$0xf]
    %v658 = vld [vmem:[#allocation11 + $0x4c] sm:$0xf]
    %v659 = vld [vmem:[#allocation11 + $0x50] sm:$0xf]
    %v660 = vld [vmem:[#allocation11 + $0x54] sm:$0xf]
    %v661 = vld [vmem:[#allocation11 + $0x58] sm:$0xf]
    %v662 = vld [vmem:[#allocation11 + $0x5c] sm:$0xf]
    %v663 = vld [vmem:[#allocation11 + $0x60] sm:$0xf]
    %v664 = vld [vmem:[#allocation11 + $0x64] sm:$0xf]
    %v665 = vld [vmem:[#allocation11 + $0x68] sm:$0xf]
    %v666 = vld [vmem:[#allocation11 + $0x6c] sm:$0xf]
    %v667 = vld [vmem:[#allocation11 + $0x70] sm:$0xf]
    %v668 = vld [vmem:[#allocation11 + $0x74] sm:$0xf]
    %v669 = vld [vmem:[#allocation11 + $0x78] sm:$0xf]
    %v670 = vld [vmem:[#allocation11 + $0x7c] sm:$0xf]
    %v671 = vld [vmem:[%s8] sm:$0x1]
    %v673 = vperm.slane %v671, 0
    %v707 = vunpack.c.l.b16 %v639
    %v708 = vunpack.c.l.b16 %v640
    %v709 = vunpack.c.l.b16 %v641
    %v710 = vunpack.c.l.b16 %v642
    %v711 = vunpack.c.l.b16 %v643
    %v712 = vunpack.c.l.b16 %v644
    %v713 = vunpack.c.l.b16 %v645
    %v714 = vunpack.c.l.b16 %v646
    %v715 = vunpack.c.l.b16 %v647
    %v716 = vunpack.c.l.b16 %v648
    %v717 = vunpack.c.l.b16 %v649
    %v718 = vunpack.c.l.b16 %v650
    %v719 = vunpack.c.l.b16 %v651
    %v720 = vunpack.c.l.b16 %v652
    %v721 = vunpack.c.l.b16 %v653
    %v722 = vunpack.c.l.b16 %v654
    %v723 = vunpack.c.l.b16 %v655
    %v724 = vunpack.c.l.b16 %v656
    %v725 = vunpack.c.l.b16 %v657
    %v726 = vunpack.c.l.b16 %v658
    %v727 = vunpack.c.l.b16 %v659
    %v728 = vunpack.c.l.b16 %v660
    %v729 = vunpack.c.l.b16 %v661
    %v730 = vunpack.c.l.b16 %v662
    %v731 = vunpack.c.l.b16 %v663
    %v732 = vunpack.c.l.b16 %v664
    %v733 = vunpack.c.l.b16 %v665
    %v734 = vunpack.c.l.b16 %v666
    %v735 = vunpack.c.l.b16 %v667
    %v736 = vunpack.c.l.b16 %v668
    %v737 = vunpack.c.l.b16 %v669
    %v738 = vunpack.c.l.b16 %v670
    %v739 = vpack.c.b16 %v708, %v707
    %v740 = vpack.c.b16 %v710, %v709
    %v741 = vpack.c.b16 %v712, %v711
    %v742 = vpack.c.b16 %v714, %v713
    %v743 = vpack.c.b16 %v716, %v715
    %v744 = vpack.c.b16 %v718, %v717
    %v745 = vpack.c.b16 %v720, %v719
    %v746 = vpack.c.b16 %v722, %v721
    %v747 = vpack.c.b16 %v724, %v723
    %v748 = vpack.c.b16 %v726, %v725
    %v749 = vpack.c.b16 %v728, %v727
    %v750 = vpack.c.b16 %v730, %v729
    %v751 = vpack.c.b16 %v732, %v731
    %v752 = vpack.c.b16 %v734, %v733
    %v753 = vpack.c.b16 %v736, %v735
    %v754 = vpack.c.b16 %v738, %v737
    %771 = vmatpush.bf16.msra.mxu0 %v746
    %772 = vmatpush.bf16.msra.mxu0 %v745
    %773 = vmatpush.bf16.msra.mxu0 %v744
    %774 = vmatpush.bf16.msra.mxu0 %v743
    %775 = vmatpush.bf16.msra.mxu0 %v742
    %776 = vmatpush.bf16.msra.mxu0 %v741
    %777 = vmatpush.bf16.msra.mxu0 %v740
    %778 = vmatpush.bf16.msra.mxu0 %v739
    %779 = vmatmul.bf16.gmra.mxu0 %v637
    %v780 = vpop.f32.mrf.mxu0
    %v781 = vadd.f32 %v673, %v780
    %v782 = vpop.f32.mrf.mxu0
    %783 = vdwg.mxu0
    %784 = vmatpush.bf16.msra.mxu0 %v754
    %785 = vmatpush.bf16.msra.mxu0 %v753
    %786 = vmatpush.bf16.msra.mxu0 %v752
    %787 = vmatpush.bf16.msra.mxu0 %v751
    %788 = vmatpush.bf16.msra.mxu0 %v750
    %789 = vmatpush.bf16.msra.mxu0 %v749
    %790 = vmatpush.bf16.msra.mxu0 %v748
    %791 = vmatpush.bf16.msra.mxu0 %v747
    %792 = vmatmul.bf16.gmra.mxu0 %v638
    %v793 = vpop.f32.mrf.mxu0
    %v794 = vadd.f32 %v781, %v793
    %v795 = vpop.f32.mrf.mxu0
    %796 = vdwg.mxu0
    %797 = vst [vmem:[#allocation13] sm:$0xff] %v794
    // Predicated region
    $region62: #{tpu_custom_call.1} parent=1 // pred_check
      _
    $region63: #{tpu_custom_call.1} parent=1 // pred_check_branch
      %799 = sbr.rel (0) target = $region65
    $region64: #{tpu_custom_call.1} parent=1 // pred_region
      %801 = vsyncadd [#allocation4], 0
      %s803 = sshll.u32 [#allocation13], 4
      %s804 = int_to_ptr.vmem [resolvable:$true] %s803
      %s805 = sshll.u32 %s9, 4
      %s806 = int_to_ptr.hbm [resolvable:$true] %s805
      %808 = dma.vmem_to_hbm [thread:$0]  %s804, 128, %s806, [#allocation4]
    $region65: #{tpu_custom_call.1} parent=1 // pred_fallthru
      _
    // Predicated region
    $region66: #{tpu_custom_call.1} parent=1 // pred_check
      _
    $region67: #{tpu_custom_call.1} parent=1 // pred_check_branch
      %810 = sbr.rel (0) target = $region69
    $region68: #{tpu_custom_call.1} parent=1 // pred_region
      %812 = dma.done [#allocation4], 128
    $region69: #{tpu_custom_call.1} parent=1 // pred_fallthru
      _
    %813 = vsyncpa [#allocation3], 1
    %814 = vsyncpa [#allocation6], 1
    %815 = vsyncpa [#allocation9], 1
    %816 = vsyncpa [#allocation12], 1
    %817 = vsyncpa [#allocation4], 1

</llo_original>
